<compile_context>
chip_gen: v5e
topology: v5e:2x2
jax: 0.10.0
libtpu: 0.0.40
codegen_flags: <defaults>
</compile_context>

<pallas_src>
import functools

import jax
import jax.numpy as jnp
from jax.experimental import pallas as pl
from jax.experimental.pallas import tpu as pltpu


def _cdiv(a: int, b: int) -> int:
    return (a + b - 1) // b


def _round_up(n: int, m: int) -> int:
    return _cdiv(n, m) * m


def _pad2(a, shape):
    """Zero-pad a 2-D array up to `shape`."""
    pads = [(0, t - s) for s, t in zip(a.shape, shape)]
    return jnp.pad(a, pads)


def _tile_defaults():
    """Generation-aware (max_batch_tile, vmem_limit_bytes) defaults."""
    kind = ""
    try:
        kind = jax.devices()[0].device_kind.lower()
    except Exception:
        pass
    if "v7" in kind:
        # v7x: 64 MiB VMEM per TensorCore -> smaller per-core tile + headroom.
        return 2048, 40 * 1024 * 1024
    # v5e / v6e (128 MiB physical VMEM): large tiles amortize per-step overhead.
    return 4096, 64 * 1024 * 1024


def dnn_kernel(x_ref, w1_ref, b1_ref, w2_ref, b2_ref, w3_ref, b3_ref, out_ref):
    """Fused 3-layer MLP on one batch tile: relu(relu(x@W1+b1)@W2+b2)@W3+b3."""
    # Cast the x tile to the streaming dtype in-kernel (no separate HBM pass).
    x = x_ref[...].astype(w1_ref.dtype)
    # Layer 1: Linear(784 -> 128 padded) + ReLU, f32 accumulation on the MXU.
    h = jnp.dot(x, w1_ref[...], preferred_element_type=jnp.float32)
    h = jnp.maximum(h + b1_ref[...], 0.0)
    # Layer 2: Linear(128 -> 128) + ReLU.
    h = jnp.dot(h.astype(w2_ref.dtype), w2_ref[...],
                preferred_element_type=jnp.float32)
    h = jnp.maximum(h + b2_ref[...], 0.0)
    # Layer 3: Linear(128 -> 128), no activation (cols >= 10 are zero padding).
    h = jnp.dot(h.astype(w3_ref.dtype), w3_ref[...],
                preferred_element_type=jnp.float32)
    out_ref[...] = (h + b3_ref[...]).astype(out_ref.dtype)


@functools.partial(
    jax.jit,
    static_argnames=("max_batch_tile", "vmem_limit_bytes", "stream_dtype", "out_dtype"),
)
def dnn_forward(x, params, *, max_batch_tile=None, vmem_limit_bytes=None,
                stream_dtype=jnp.bfloat16, out_dtype=jnp.bfloat16):
    """Forward pass equivalent to DeepNeuralNet.forward (f32 logits, no softmax)."""
    (w1, b1), (w2, b2), (w3, b3) = params
    batch, d_in = x.shape
    h1, h2, n_out = w1.shape[1], w2.shape[1], w3.shape[1]
    assert d_in % 8 == 0, "input feature dim must be 8-divisible to stream unpadded"

    # Lane-dense padded widths for the (tiny) weights/biases/output.
    h1_p = _round_up(h1, 128)        # 32 -> 128
    h2_p = _round_up(h2, 128)        # 32 -> 128
    n_out_p = _round_up(n_out, 128)  # 10 -> 128

    default_tb, default_vmem = _tile_defaults()
    if max_batch_tile is None:
        max_batch_tile = default_tb
    if vmem_limit_bytes is None:
        vmem_limit_bytes = default_vmem

    # Adaptive batch tile:
    #  * >= 2 grid steps for non-tiny batches (keeps both v7x TCs + HBM paths busy),
    #  * balanced so the trailing partial tile is small,
    #  * capped by max_batch_tile and never larger than the (8-rounded) batch.
    steps = max(_cdiv(batch, max_batch_tile), 2 if batch >= 32 else 1)
    tb = min(max_batch_tile, _round_up(_cdiv(batch, steps), 16))
    tb = min(tb, _round_up(batch, 8))
    grid = (_cdiv(batch, tb),)  # non-dividing grids OK: last block is partial

    # Weights/biases: padded + cast once (a few hundred KiB), VMEM-resident
    # across all grid steps via constant index_maps.  x itself is NOT copied.
    w1_p = _pad2(w1, (d_in, h1_p)).astype(stream_dtype)
    w2_p = _pad2(w2, (h1_p, h2_p)).astype(stream_dtype)
    w3_p = _pad2(w3, (h2_p, n_out_p)).astype(stream_dtype)
    b1_p = _pad2(b1.reshape(1, -1), (1, h1_p)).astype(jnp.float32)
    b2_p = _pad2(b2.reshape(1, -1), (1, h2_p)).astype(jnp.float32)
    b3_p = _pad2(b3.reshape(1, -1), (1, n_out_p)).astype(jnp.float32)

    resident = lambda i: (0, 0)  # same block every grid step -> stays in VMEM

    out_p = pl.pallas_call(
        dnn_kernel,
        out_shape=jax.ShapeDtypeStruct((batch, n_out_p), out_dtype),
        grid=grid,
        in_specs=[
            pl.BlockSpec((tb, d_in), lambda i: (i, 0)),   # x: tiled over batch, unpadded
            pl.BlockSpec((d_in, h1_p), resident),         # W1
            pl.BlockSpec((1, h1_p), resident),            # b1
            pl.BlockSpec((h1_p, h2_p), resident),         # W2
            pl.BlockSpec((1, h2_p), resident),            # b2
            pl.BlockSpec((h2_p, n_out_p), resident),      # W3
            pl.BlockSpec((1, n_out_p), resident),         # b3
        ],
        out_specs=pl.BlockSpec((tb, n_out_p), lambda i: (i, 0)),
        compiler_params=pltpu.CompilerParams(
            dimension_semantics=("parallel",),  # shard batch tiles across TCs (v7x)
            vmem_limit_bytes=vmem_limit_bytes,
        ),
    )(x, w1_p, b1_p, w2_p, b2_p, w3_p, b3_p)

    # Strip the output-lane padding; return f32 logits (PyTorch module semantics).
    return out_p[:, :n_out].astype(jnp.float32)


def init_params(key, layer_sizes=(784, 32, 32, 10)):
    """Deterministic init mimicking nn.Linear's uniform(-1/sqrt(fan_in), 1/sqrt(fan_in))."""
    params = []
    for i in range(len(layer_sizes) - 1):
        fan_in, fan_out = layer_sizes[i], layer_sizes[i + 1]
        key, kw, kb = jax.random.split(key, 3)
        bound = 1.0 / jnp.sqrt(fan_in)
        # Stored as (in_features, out_features) => forward is x @ W + b,
        # identical semantics to PyTorch's x @ W.T with W of shape (out, in).
        w = jax.random.uniform(kw, (fan_in, fan_out), jnp.float32, -bound, bound)
        b = jax.random.uniform(kb, (1, fan_out), jnp.float32, -bound, bound)
        params.append((w, b))
    return params


def reference_forward(x, params):
    h = x
    for (w, b) in params[:-1]:
        h = jnp.maximum(h @ w + b, 0.0)
    w, b = params[-1]
    return h @ w + b


if __name__ == "__main__":
    key = jax.random.PRNGKey(0)
    key, kx = jax.random.split(key)

    batch = 8
    x = jax.random.normal(kx, (batch, 784), jnp.float32)
    params = init_params(key)

    ref = reference_forward(x, params)

    # Full-precision path (f32 streaming, f32 writeback): tight tolerance.
    out_f32 = dnn_forward(x, params, stream_dtype=jnp.float32, out_dtype=jnp.float32)
    out_f32 = jax.block_until_ready(out_f32)
    assert out_f32.shape == (batch, 10), out_f32.shape
    assert jnp.allclose(out_f32, ref, atol=1e-4, rtol=1e-4), "f32 mismatch vs reference"

    # Performance path (bf16 streaming + bf16 writeback, f32 MXU accumulation).
    out_bf16 = dnn_forward(x, params)
    out_bf16 = jax.block_until_ready(out_bf16)
    assert out_bf16.shape == (batch, 10), out_bf16.shape
    assert jnp.allclose(out_bf16, ref, atol=5e-2, rtol=5e-2), "bf16 mismatch vs reference"

    print("KERNEL_OK")
</pallas_src>

<mosaic_0001>
module attributes {stable_mosaic.version = 11 : i64} {
  func.func @dnn_kernel(%arg0: i32, %arg1: memref<8x784xf32, #tpu.memory_space<vmem>>, %arg2: memref<784x128xf32, #tpu.memory_space<vmem>>, %arg3: memref<1x128xf32, #tpu.memory_space<vmem>>, %arg4: memref<128x128xf32, #tpu.memory_space<vmem>>, %arg5: memref<1x128xf32, #tpu.memory_space<vmem>>, %arg6: memref<128x128xf32, #tpu.memory_space<vmem>>, %arg7: memref<1x128xf32, #tpu.memory_space<vmem>>, %arg8: memref<8x128xf32, #tpu.memory_space<vmem>>) attributes {dimension_semantics = [#tpu.dimension_semantics<parallel>], iteration_bounds = array<i64: 1>, scalar_prefetch = 0 : i64, scratch_operands = 0 : i64, tpu.core_type = #tpu.core_type<tc>, window_params = [{transform_indices = @transform_0, window_bounds = array<i64: 8, 784>}, {pipeline_mode = #tpu.pipeline_mode<synchronous>, transform_indices = @transform_1, window_bounds = array<i64: 784, 128>}, {pipeline_mode = #tpu.pipeline_mode<synchronous>, transform_indices = @transform_2, window_bounds = array<i64: 1, 128>}, {pipeline_mode = #tpu.pipeline_mode<synchronous>, transform_indices = @transform_3, window_bounds = array<i64: 128, 128>}, {pipeline_mode = #tpu.pipeline_mode<synchronous>, transform_indices = @transform_4, window_bounds = array<i64: 1, 128>}, {pipeline_mode = #tpu.pipeline_mode<synchronous>, transform_indices = @transform_5, window_bounds = array<i64: 128, 128>}, {pipeline_mode = #tpu.pipeline_mode<synchronous>, transform_indices = @transform_6, window_bounds = array<i64: 1, 128>}, {transform_indices = @transform_7, window_bounds = array<i64: 8, 128>}]} {
    %c0 = arith.constant 0 : index
    %c0_0 = arith.constant 0 : index
    %0 = vector.load %arg1[%c0, %c0_0] : memref<8x784xf32, #tpu.memory_space<vmem>>, vector<8x784xf32>
    %c0_1 = arith.constant 0 : index
    %c0_2 = arith.constant 0 : index
    %1 = vector.load %arg2[%c0_1, %c0_2] : memref<784x128xf32, #tpu.memory_space<vmem>>, vector<784x128xf32>
    %cst = arith.constant dense<0.000000e+00> : vector<8x128xf32>
    %2 = tpu.matmul %0, %1, %cst {dimension_numbers = #tpu.dot_dimension_numbers<[1], [0], [0], [1], [0, 0, 1, 1], [], []>} : vector<8x784xf32>, vector<784x128xf32>, vector<8x128xf32> -> vector<8x128xf32>
    %c0_3 = arith.constant 0 : index
    %c0_4 = arith.constant 0 : index
    %3 = vector.load %arg3[%c0_3, %c0_4] : memref<1x128xf32, #tpu.memory_space<vmem>>, vector<1x128xf32>
    %4 = vector.broadcast %3 : vector<1x128xf32> to vector<8x128xf32>
    %5 = arith.addf %2, %4 : vector<8x128xf32>
    %cst_5 = arith.constant 0.000000e+00 : f32
    %6 = vector.broadcast %cst_5 : f32 to vector<8x128xf32>
    %7 = arith.maximumf %5, %6 : vector<8x128xf32>
    %c0_6 = arith.constant 0 : index
    %c0_7 = arith.constant 0 : index
    %8 = vector.load %arg4[%c0_6, %c0_7] : memref<128x128xf32, #tpu.memory_space<vmem>>, vector<128x128xf32>
    %cst_8 = arith.constant dense<0.000000e+00> : vector<8x128xf32>
    %9 = tpu.matmul %7, %8, %cst_8 {dimension_numbers = #tpu.dot_dimension_numbers<[1], [0], [0], [1], [0, 0, 1, 1], [], []>} : vector<8x128xf32>, vector<128x128xf32>, vector<8x128xf32> -> vector<8x128xf32>
    %c0_9 = arith.constant 0 : index
    %c0_10 = arith.constant 0 : index
    %10 = vector.load %arg5[%c0_9, %c0_10] : memref<1x128xf32, #tpu.memory_space<vmem>>, vector<1x128xf32>
    %11 = vector.broadcast %10 : vector<1x128xf32> to vector<8x128xf32>
    %12 = arith.addf %9, %11 : vector<8x128xf32>
    %cst_11 = arith.constant 0.000000e+00 : f32
    %13 = vector.broadcast %cst_11 : f32 to vector<8x128xf32>
    %14 = arith.maximumf %12, %13 : vector<8x128xf32>
    %c0_12 = arith.constant 0 : index
    %c0_13 = arith.constant 0 : index
    %15 = vector.load %arg6[%c0_12, %c0_13] : memref<128x128xf32, #tpu.memory_space<vmem>>, vector<128x128xf32>
    %cst_14 = arith.constant dense<0.000000e+00> : vector<8x128xf32>
    %16 = tpu.matmul %14, %15, %cst_14 {dimension_numbers = #tpu.dot_dimension_numbers<[1], [0], [0], [1], [0, 0, 1, 1], [], []>} : vector<8x128xf32>, vector<128x128xf32>, vector<8x128xf32> -> vector<8x128xf32>
    %c0_15 = arith.constant 0 : index
    %c0_16 = arith.constant 0 : index
    %17 = vector.load %arg7[%c0_15, %c0_16] : memref<1x128xf32, #tpu.memory_space<vmem>>, vector<1x128xf32>
    %18 = vector.broadcast %17 : vector<1x128xf32> to vector<8x128xf32>
    %19 = arith.addf %16, %18 : vector<8x128xf32>
    %c0_17 = arith.constant 0 : index
    %c0_18 = arith.constant 0 : index
    %20 = vector.load %arg8[%c0_17, %c0_18] : memref<8x128xf32, #tpu.memory_space<vmem>>, vector<8x128xf32>
    tpu.vector_store %arg8[%c0_17, %c0_18], %19 {strides = array<i32>} : memref<8x128xf32, #tpu.memory_space<vmem>>, vector<8x128xf32>,
    return
  }
  func.func @transform_0(%arg0: i32) -> (i32, i32) {
    %c0_i32 = arith.constant 0 : i32
    %c0_i32_0 = arith.constant 0 : i32
    return %arg0, %c0_i32 : i32, i32
  }
  func.func @transform_1(%arg0: i32) -> (i32, i32) {
    %c0_i32 = arith.constant 0 : i32
    %c0_i32_0 = arith.constant 0 : i32
    %c0_i32_1 = arith.constant 0 : i32
    return %c0_i32, %c0_i32_0 : i32, i32
  }
  func.func @transform_2(%arg0: i32) -> (i32, i32) {
    %c0_i32 = arith.constant 0 : i32
    %c0_i32_0 = arith.constant 0 : i32
    %c0_i32_1 = arith.constant 0 : i32
    return %c0_i32, %c0_i32_0 : i32, i32
  }
  func.func @transform_3(%arg0: i32) -> (i32, i32) {
    %c0_i32 = arith.constant 0 : i32
    %c0_i32_0 = arith.constant 0 : i32
    %c0_i32_1 = arith.constant 0 : i32
    return %c0_i32, %c0_i32_0 : i32, i32
  }
  func.func @transform_4(%arg0: i32) -> (i32, i32) {
    %c0_i32 = arith.constant 0 : i32
    %c0_i32_0 = arith.constant 0 : i32
    %c0_i32_1 = arith.constant 0 : i32
    return %c0_i32, %c0_i32_0 : i32, i32
  }
  func.func @transform_5(%arg0: i32) -> (i32, i32) {
    %c0_i32 = arith.constant 0 : i32
    %c0_i32_0 = arith.constant 0 : i32
    %c0_i32_1 = arith.constant 0 : i32
    return %c0_i32, %c0_i32_0 : i32, i32
  }
  func.func @transform_6(%arg0: i32) -> (i32, i32) {
    %c0_i32 = arith.constant 0 : i32
    %c0_i32_0 = arith.constant 0 : i32
    %c0_i32_1 = arith.constant 0 : i32
    return %c0_i32, %c0_i32_0 : i32, i32
  }
  func.func @transform_7(%arg0: i32) -> (i32, i32) {
    %c0_i32 = arith.constant 0 : i32
    %c0_i32_0 = arith.constant 0 : i32
    return %arg0, %c0_i32 : i32, i32
  }
}

</mosaic_0001>

<llo_original>
// kernel: dnn_forward.1
$region0: #{dnn_forward.1}
  #allocation0 [shape = 'u32[]', space=smem, size = 0x4, offset = 0x4, fixed_abs, tag = 'smem constant byte address 0x4 - core index']
  #allocation1 [shape = 'u32[72,128]{1,0:T(1,128)}', space=vmem, size = 0x9000, scoped, tag = 'internal scratch']
  %s0 = inlined_call_operand.vmem [shape: f32[8,784], index: 0, kind: input, shape index: {}]
  %s1 = inlined_call_operand.vmem [shape: f32[784,128], index: 1, kind: input, shape index: {}]
  %s2 = inlined_call_operand.vmem [shape: f32[1,128], index: 2, kind: input, shape index: {}]
  %s3 = inlined_call_operand.vmem [shape: f32[128,128], index: 3, kind: input, shape index: {}]
  %s4 = inlined_call_operand.vmem [shape: f32[1,128], index: 4, kind: input, shape index: {}]
  %s5 = inlined_call_operand.vmem [shape: f32[128,128], index: 5, kind: input, shape index: {}]
  %s6 = inlined_call_operand.vmem [shape: f32[1,128], index: 6, kind: input, shape index: {}]
  %s7 = inlined_call_operand.hbm [shape: f32[8,128], index: 7, kind: output, shape index: {}]
  %s8 = sld [smem:[#allocation0]]
  $region38: #{dnn_forward.1} parent=0
    _
  %s10 = ssub.s32 1, %s8
  %s11 = scalar_select 0, %s10, %s8
  $region1: #{dnn_forward.1} parent=0
    #allocation2 [shape = 'u8[4096]{0}', space=vmem, size = 0x1000, scoped, tag = 'output window, operand 0, single buffered']
    #allocation3 [shape = 's32[1]{0}', space=sflag, size = 0x4, scoped, tag = 'scoped memory for dnn_forward.1']
    %12 = vsyncpa [#allocation3], 0
    // Predicated region
    $region2: #{dnn_forward.1} parent=1 // pred_check
      _
    $region3: #{dnn_forward.1} parent=1 // pred_check_branch
      %14 = sbr.rel (0) target = $region5
    $region4: #{dnn_forward.1} parent=1 // pred_region
      _
    $region5: #{dnn_forward.1} parent=1 // pred_fallthru
      _
    // Predicated region
    $region6: #{dnn_forward.1} parent=1 // pred_check
      _
    $region7: #{dnn_forward.1} parent=1 // pred_check_branch
      %16 = sbr.rel (0) target = $region9
    $region8: #{dnn_forward.1} parent=1 // pred_region
      _
    $region9: #{dnn_forward.1} parent=1 // pred_fallthru
      _
    // Predicated region
    $region10: #{dnn_forward.1} parent=1 // pred_check
      _
    $region11: #{dnn_forward.1} parent=1 // pred_check_branch
      %18 = sbr.rel (0) target = $region13
    $region12: #{dnn_forward.1} parent=1 // pred_region
      _
    $region13: #{dnn_forward.1} parent=1 // pred_fallthru
      _
    // Predicated region
    $region14: #{dnn_forward.1} parent=1 // pred_check
      _
    $region15: #{dnn_forward.1} parent=1 // pred_check_branch
      %20 = sbr.rel (0) target = $region17
    $region16: #{dnn_forward.1} parent=1 // pred_region
      _
    $region17: #{dnn_forward.1} parent=1 // pred_fallthru
      _
    // Predicated region
    $region18: #{dnn_forward.1} parent=1 // pred_check
      _
    $region19: #{dnn_forward.1} parent=1 // pred_check_branch
      %22 = sbr.rel (0) target = $region21
    $region20: #{dnn_forward.1} parent=1 // pred_region
      _
    $region21: #{dnn_forward.1} parent=1 // pred_fallthru
      _
    // Predicated region
    $region22: #{dnn_forward.1} parent=1 // pred_check
      _
    $region23: #{dnn_forward.1} parent=1 // pred_check_branch
      %24 = sbr.rel (0) target = $region25
    $region24: #{dnn_forward.1} parent=1 // pred_region
      _
    $region25: #{dnn_forward.1} parent=1 // pred_fallthru
      _
    // Predicated region
    $region26: #{dnn_forward.1} parent=1 // pred_check
      _
    $region27: #{dnn_forward.1} parent=1 // pred_check_branch
      %26 = sbr.rel (0) target = $region29
    $region28: #{dnn_forward.1} parent=1 // pred_region
      _
    $region29: #{dnn_forward.1} parent=1 // pred_fallthru
      _
    %v27 = vld [vmem:[%s0] sm:$0xff]
    %v28 = vld [vmem:[%s0 + $0x8] sm:$0xff]
    %v29 = vld [vmem:[%s0 + $0x10] sm:$0xff]
    %v30 = vld [vmem:[%s0 + $0x18] sm:$0xff]
    %v31 = vld [vmem:[%s0 + $0x20] sm:$0xff]
    %v32 = vld [vmem:[%s0 + $0x28] sm:$0xff]
    %v33 = vld [vmem:[%s0 + $0x30] sm:$0xff]
    %v34 = vld [vmem:[%s1] sm:$0xff]
    %v35 = vld [vmem:[%s1 + $0x8] sm:$0xff]
    %v36 = vld [vmem:[%s1 + $0x10] sm:$0xff]
    %v37 = vld [vmem:[%s1 + $0x18] sm:$0xff]
    %v38 = vld [vmem:[%s1 + $0x20] sm:$0xff]
    %v39 = vld [vmem:[%s1 + $0x28] sm:$0xff]
    %v40 = vld [vmem:[%s1 + $0x30] sm:$0xff]
    %v41 = vld [vmem:[%s1 + $0x38] sm:$0xff]
    %v42 = vld [vmem:[%s1 + $0x40] sm:$0xff]
    %v43 = vld [vmem:[%s1 + $0x48] sm:$0xff]
    %v44 = vld [vmem:[%s1 + $0x50] sm:$0xff]
    %v45 = vld [vmem:[%s1 + $0x58] sm:$0xff]
    %v46 = vld [vmem:[%s1 + $0x60] sm:$0xff]
    %v47 = vld [vmem:[%s1 + $0x68] sm:$0xff]
    %v48 = vld [vmem:[%s1 + $0x70] sm:$0xff]
    %v49 = vld [vmem:[%s1 + $0x78] sm:$0xff]
    %v50 = vld [vmem:[%s1 + $0x80] sm:$0xff]
    %v51 = vld [vmem:[%s1 + $0x88] sm:$0xff]
    %v52 = vld [vmem:[%s1 + $0x90] sm:$0xff]
    %v53 = vld [vmem:[%s1 + $0x98] sm:$0xff]
    %v54 = vld [vmem:[%s1 + $0xa0] sm:$0xff]
    %v55 = vld [vmem:[%s1 + $0xa8] sm:$0xff]
    %v56 = vld [vmem:[%s1 + $0xb0] sm:$0xff]
    %v57 = vld [vmem:[%s1 + $0xb8] sm:$0xff]
    %v58 = vld [vmem:[%s1 + $0xc0] sm:$0xff]
    %v59 = vld [vmem:[%s1 + $0xc8] sm:$0xff]
    %v60 = vld [vmem:[%s1 + $0xd0] sm:$0xff]
    %v61 = vld [vmem:[%s1 + $0xd8] sm:$0xff]
    %v62 = vld [vmem:[%s1 + $0xe0] sm:$0xff]
    %v63 = vld [vmem:[%s1 + $0xe8] sm:$0xff]
    %v64 = vld [vmem:[%s1 + $0xf0] sm:$0xff]
    %v65 = vld [vmem:[%s1 + $0xf8] sm:$0xff]
    %v66 = vld [vmem:[%s1 + $0x100] sm:$0xff]
    %v67 = vld [vmem:[%s1 + $0x108] sm:$0xff]
    %v68 = vld [vmem:[%s1 + $0x110] sm:$0xff]
    %v69 = vld [vmem:[%s1 + $0x118] sm:$0xff]
    %v70 = vld [vmem:[%s1 + $0x120] sm:$0xff]
    %v71 = vld [vmem:[%s1 + $0x128] sm:$0xff]
    %v72 = vld [vmem:[%s1 + $0x130] sm:$0xff]
    %v73 = vld [vmem:[%s1 + $0x138] sm:$0xff]
    %v74 = vld [vmem:[%s1 + $0x140] sm:$0xff]
    %v75 = vld [vmem:[%s1 + $0x148] sm:$0xff]
    %v76 = vld [vmem:[%s1 + $0x150] sm:$0xff]
    %v77 = vld [vmem:[%s1 + $0x158] sm:$0xff]
    %v78 = vld [vmem:[%s1 + $0x160] sm:$0xff]
    %v79 = vld [vmem:[%s1 + $0x168] sm:$0xff]
    %v80 = vld [vmem:[%s1 + $0x170] sm:$0xff]
    %v81 = vld [vmem:[%s1 + $0x178] sm:$0xff]
    %v82 = vld [vmem:[%s1 + $0x180] sm:$0xff]
    %v83 = vld [vmem:[%s1 + $0x188] sm:$0xff]
    %v84 = vld [vmem:[%s1 + $0x190] sm:$0xff]
    %v85 = vld [vmem:[%s1 + $0x198] sm:$0xff]
    %v86 = vld [vmem:[%s1 + $0x1a0] sm:$0xff]
    %v87 = vld [vmem:[%s1 + $0x1a8] sm:$0xff]
    %v88 = vld [vmem:[%s1 + $0x1b0] sm:$0xff]
    %v89 = vld [vmem:[%s1 + $0x1b8] sm:$0xff]
    %v90 = vld [vmem:[%s1 + $0x1c0] sm:$0xff]
    %v91 = vld [vmem:[%s1 + $0x1c8] sm:$0xff]
    %v92 = vld [vmem:[%s1 + $0x1d0] sm:$0xff]
    %v93 = vld [vmem:[%s1 + $0x1d8] sm:$0xff]
    %v94 = vld [vmem:[%s1 + $0x1e0] sm:$0xff]
    %v95 = vld [vmem:[%s1 + $0x1e8] sm:$0xff]
    %v96 = vld [vmem:[%s1 + $0x1f0] sm:$0xff]
    %v97 = vld [vmem:[%s1 + $0x1f8] sm:$0xff]
    %v98 = vld [vmem:[%s1 + $0x200] sm:$0xff]
    %v99 = vld [vmem:[%s1 + $0x208] sm:$0xff]
    %v100 = vld [vmem:[%s1 + $0x210] sm:$0xff]
    %v101 = vld [vmem:[%s1 + $0x218] sm:$0xff]
    %v102 = vld [vmem:[%s1 + $0x220] sm:$0xff]
    %v103 = vld [vmem:[%s1 + $0x228] sm:$0xff]
    %v104 = vld [vmem:[%s1 + $0x230] sm:$0xff]
    %v105 = vld [vmem:[%s1 + $0x238] sm:$0xff]
    %v106 = vld [vmem:[%s1 + $0x240] sm:$0xff]
    %v107 = vld [vmem:[%s1 + $0x248] sm:$0xff]
    %v108 = vld [vmem:[%s1 + $0x250] sm:$0xff]
    %v109 = vld [vmem:[%s1 + $0x258] sm:$0xff]
    %v110 = vld [vmem:[%s1 + $0x260] sm:$0xff]
    %v111 = vld [vmem:[%s1 + $0x268] sm:$0xff]
    %v112 = vld [vmem:[%s1 + $0x270] sm:$0xff]
    %v113 = vld [vmem:[%s1 + $0x278] sm:$0xff]
    %v114 = vld [vmem:[%s1 + $0x280] sm:$0xff]
    %v115 = vld [vmem:[%s1 + $0x288] sm:$0xff]
    %v116 = vld [vmem:[%s1 + $0x290] sm:$0xff]
    %v117 = vld [vmem:[%s1 + $0x298] sm:$0xff]
    %v118 = vld [vmem:[%s1 + $0x2a0] sm:$0xff]
    %v119 = vld [vmem:[%s1 + $0x2a8] sm:$0xff]
    %v120 = vld [vmem:[%s1 + $0x2b0] sm:$0xff]
    %v121 = vld [vmem:[%s1 + $0x2b8] sm:$0xff]
    %v122 = vld [vmem:[%s1 + $0x2c0] sm:$0xff]
    %v123 = vld [vmem:[%s1 + $0x2c8] sm:$0xff]
    %v124 = vld [vmem:[%s1 + $0x2d0] sm:$0xff]
    %v125 = vld [vmem:[%s1 + $0x2d8] sm:$0xff]
    %v126 = vld [vmem:[%s1 + $0x2e0] sm:$0xff]
    %v127 = vld [vmem:[%s1 + $0x2e8] sm:$0xff]
    %v128 = vld [vmem:[%s1 + $0x2f0] sm:$0xff]
    %v129 = vld [vmem:[%s1 + $0x2f8] sm:$0xff]
    %v130 = vld [vmem:[%s1 + $0x300] sm:$0xff]
    %v131 = vld [vmem:[%s1 + $0x308] sm:$0xff]
    %v132 = vld [vmem:[%s2] sm:$0x1]
    %v134 = vperm.slane %v132, 0
    %vm136 = vcmask 130048
    %v138 = vsel %vm136, %v33, 0
    %140 = vmatpush.msra.mxu0 %v49
    %141 = vmatpush.msra.mxu0 %v48
    %142 = vmatpush.msra.mxu0 %v47
    %143 = vmatpush.msra.mxu0 %v46
    %144 = vmatpush.msra.mxu0 %v45
    %145 = vmatpush.msra.mxu0 %v44
    %146 = vmatpush.msra.mxu0 %v43
    %147 = vmatpush.msra.mxu0 %v42
    %148 = vmatpush.msra.mxu0 %v41
    %149 = vmatpush.msra.mxu0 %v40
    %150 = vmatpush.msra.mxu0 %v39
    %151 = vmatpush.msra.mxu0 %v38
    %152 = vmatpush.msra.mxu0 %v37
    %153 = vmatpush.msra.mxu0 %v36
    %154 = vmatpush.msra.mxu0 %v35
    %155 = vmatpush.msra.mxu0 %v34
    %156 = vmatmul.f32.gmra.mxu0 %v27
    %v157 = vpop.f32.mrf.mxu0
    %v158 = vadd.f32 %v134, %v157
    %159 = vdwg.mxu0
    %160 = vmatpush.msra.mxu0 %v65
    %161 = vmatpush.msra.mxu0 %v64
    %162 = vmatpush.msra.mxu0 %v63
    %163 = vmatpush.msra.mxu0 %v62
    %164 = vmatpush.msra.mxu0 %v61
    %165 = vmatpush.msra.mxu0 %v60
    %166 = vmatpush.msra.mxu0 %v59
    %167 = vmatpush.msra.mxu0 %v58
    %168 = vmatpush.msra.mxu0 %v57
    %169 = vmatpush.msra.mxu0 %v56
    %170 = vmatpush.msra.mxu0 %v55
    %171 = vmatpush.msra.mxu0 %v54
    %172 = vmatpush.msra.mxu0 %v53
    %173 = vmatpush.msra.mxu0 %v52
    %174 = vmatpush.msra.mxu0 %v51
    %175 = vmatpush.msra.mxu0 %v50
    %176 = vmatmul.f32.gmra.mxu0 %v28
    %v177 = vpop.f32.mrf.mxu0
    %v178 = vadd.f32 %v158, %v177
    %179 = vdwg.mxu0
    %180 = vmatpush.msra.mxu0 %v81
    %181 = vmatpush.msra.mxu0 %v80
    %182 = vmatpush.msra.mxu0 %v79
    %183 = vmatpush.msra.mxu0 %v78
    %184 = vmatpush.msra.mxu0 %v77
    %185 = vmatpush.msra.mxu0 %v76
    %186 = vmatpush.msra.mxu0 %v75
    %187 = vmatpush.msra.mxu0 %v74
    %188 = vmatpush.msra.mxu0 %v73
    %189 = vmatpush.msra.mxu0 %v72
    %190 = vmatpush.msra.mxu0 %v71
    %191 = vmatpush.msra.mxu0 %v70
    %192 = vmatpush.msra.mxu0 %v69
    %193 = vmatpush.msra.mxu0 %v68
    %194 = vmatpush.msra.mxu0 %v67
    %195 = vmatpush.msra.mxu0 %v66
    %196 = vmatmul.f32.gmra.mxu0 %v29
    %v197 = vpop.f32.mrf.mxu0
    %v198 = vadd.f32 %v178, %v197
    %199 = vdwg.mxu0
    %200 = vmatpush.msra.mxu0 %v97
    %201 = vmatpush.msra.mxu0 %v96
    %202 = vmatpush.msra.mxu0 %v95
    %203 = vmatpush.msra.mxu0 %v94
    %204 = vmatpush.msra.mxu0 %v93
    %205 = vmatpush.msra.mxu0 %v92
    %206 = vmatpush.msra.mxu0 %v91
    %207 = vmatpush.msra.mxu0 %v90
    %208 = vmatpush.msra.mxu0 %v89
    %209 = vmatpush.msra.mxu0 %v88
    %210 = vmatpush.msra.mxu0 %v87
    %211 = vmatpush.msra.mxu0 %v86
    %212 = vmatpush.msra.mxu0 %v85
    %213 = vmatpush.msra.mxu0 %v84
    %214 = vmatpush.msra.mxu0 %v83
    %215 = vmatpush.msra.mxu0 %v82
    %216 = vmatmul.f32.gmra.mxu0 %v30
    %v217 = vpop.f32.mrf.mxu0
    %v218 = vadd.f32 %v198, %v217
    %219 = vdwg.mxu0
    %220 = vmatpush.msra.mxu0 %v113
    %221 = vmatpush.msra.mxu0 %v112
    %222 = vmatpush.msra.mxu0 %v111
    %223 = vmatpush.msra.mxu0 %v110
    %224 = vmatpush.msra.mxu0 %v109
    %225 = vmatpush.msra.mxu0 %v108
    %226 = vmatpush.msra.mxu0 %v107
    %227 = vmatpush.msra.mxu0 %v106
    %228 = vmatpush.msra.mxu0 %v105
    %229 = vmatpush.msra.mxu0 %v104
    %230 = vmatpush.msra.mxu0 %v103
    %231 = vmatpush.msra.mxu0 %v102
    %232 = vmatpush.msra.mxu0 %v101
    %233 = vmatpush.msra.mxu0 %v100
    %234 = vmatpush.msra.mxu0 %v99
    %235 = vmatpush.msra.mxu0 %v98
    %236 = vmatmul.f32.gmra.mxu0 %v31
    %v237 = vpop.f32.mrf.mxu0
    %v238 = vadd.f32 %v218, %v237
    %239 = vdwg.mxu0
    %240 = vmatpush.msra.mxu0 %v129
    %241 = vmatpush.msra.mxu0 %v128
    %242 = vmatpush.msra.mxu0 %v127
    %243 = vmatpush.msra.mxu0 %v126
    %244 = vmatpush.msra.mxu0 %v125
    %245 = vmatpush.msra.mxu0 %v124
    %246 = vmatpush.msra.mxu0 %v123
    %247 = vmatpush.msra.mxu0 %v122
    %248 = vmatpush.msra.mxu0 %v121
    %249 = vmatpush.msra.mxu0 %v120
    %250 = vmatpush.msra.mxu0 %v119
    %251 = vmatpush.msra.mxu0 %v118
    %252 = vmatpush.msra.mxu0 %v117
    %253 = vmatpush.msra.mxu0 %v116
    %254 = vmatpush.msra.mxu0 %v115
    %255 = vmatpush.msra.mxu0 %v114
    %256 = vmatmul.f32.gmra.mxu0 %v32
    %v257 = vpop.f32.mrf.mxu0
    %v258 = vadd.f32 %v238, %v257
    %259 = vdwg.mxu0
    %260 = vmatpush.msra.mxu0 0.0
    %261 = vmatpush.msra.mxu0 0.0
    %262 = vmatpush.msra.mxu0 0.0
    %263 = vmatpush.msra.mxu0 0.0
    %264 = vmatpush.msra.mxu0 0.0
    %265 = vmatpush.msra.mxu0 0.0
    %266 = vmatpush.msra.mxu0 0.0
    %267 = vmatpush.msra.mxu0 0.0
    %268 = vmatpush.msra.mxu0 0.0
    %269 = vmatpush.msra.mxu0 0.0
    %270 = vmatpush.msra.mxu0 0.0
    %271 = vmatpush.msra.mxu0 0.0
    %272 = vmatpush.msra.mxu0 0.0
    %273 = vmatpush.msra.mxu0 0.0
    %274 = vmatpush.msra.mxu0 %v131
    %275 = vmatpush.msra.mxu0 %v130
    %276 = vmatmul.f32.gmra.mxu0 %v138
    %v277 = vpop.f32.mrf.mxu0
    %v278 = vadd.f32 %v258, %v277
    %279 = vdwg.mxu0
    %v280 = vmax.f32 %v278, 0.0
    %v281 = vld [vmem:[%s3] sm:$0xff]
    %v282 = vld [vmem:[%s3 + $0x8] sm:$0xff]
    %v283 = vld [vmem:[%s3 + $0x10] sm:$0xff]
    %v284 = vld [vmem:[%s3 + $0x18] sm:$0xff]
    %v285 = vld [vmem:[%s3 + $0x20] sm:$0xff]
    %v286 = vld [vmem:[%s3 + $0x28] sm:$0xff]
    %v287 = vld [vmem:[%s3 + $0x30] sm:$0xff]
    %v288 = vld [vmem:[%s3 + $0x38] sm:$0xff]
    %v289 = vld [vmem:[%s3 + $0x40] sm:$0xff]
    %v290 = vld [vmem:[%s3 + $0x48] sm:$0xff]
    %v291 = vld [vmem:[%s3 + $0x50] sm:$0xff]
    %v292 = vld [vmem:[%s3 + $0x58] sm:$0xff]
    %v293 = vld [vmem:[%s3 + $0x60] sm:$0xff]
    %v294 = vld [vmem:[%s3 + $0x68] sm:$0xff]
    %v295 = vld [vmem:[%s3 + $0x70] sm:$0xff]
    %v296 = vld [vmem:[%s3 + $0x78] sm:$0xff]
    %v297 = vld [vmem:[%s4] sm:$0x1]
    %v299 = vperm.slane %v297, 0
    %301 = vmatpush.msra.mxu0 %v296
    %302 = vmatpush.msra.mxu0 %v295
    %303 = vmatpush.msra.mxu0 %v294
    %304 = vmatpush.msra.mxu0 %v293
    %305 = vmatpush.msra.mxu0 %v292
    %306 = vmatpush.msra.mxu0 %v291
    %307 = vmatpush.msra.mxu0 %v290
    %308 = vmatpush.msra.mxu0 %v289
    %309 = vmatpush.msra.mxu0 %v288
    %310 = vmatpush.msra.mxu0 %v287
    %311 = vmatpush.msra.mxu0 %v286
    %312 = vmatpush.msra.mxu0 %v285
    %313 = vmatpush.msra.mxu0 %v284
    %314 = vmatpush.msra.mxu0 %v283
    %315 = vmatpush.msra.mxu0 %v282
    %316 = vmatpush.msra.mxu0 %v281
    %317 = vmatmul.f32.gmra.mxu0 %v280
    %v318 = vpop.f32.mrf.mxu0
    %v319 = vadd.f32 %v299, %v318
    %320 = vdwg.mxu0
    %v321 = vmax.f32 %v319, 0.0
    %v322 = vld [vmem:[%s5] sm:$0xff]
    %v323 = vld [vmem:[%s5 + $0x8] sm:$0xff]
    %v324 = vld [vmem:[%s5 + $0x10] sm:$0xff]
    %v325 = vld [vmem:[%s5 + $0x18] sm:$0xff]
    %v326 = vld [vmem:[%s5 + $0x20] sm:$0xff]
    %v327 = vld [vmem:[%s5 + $0x28] sm:$0xff]
    %v328 = vld [vmem:[%s5 + $0x30] sm:$0xff]
    %v329 = vld [vmem:[%s5 + $0x38] sm:$0xff]
    %v330 = vld [vmem:[%s5 + $0x40] sm:$0xff]
    %v331 = vld [vmem:[%s5 + $0x48] sm:$0xff]
    %v332 = vld [vmem:[%s5 + $0x50] sm:$0xff]
    %v333 = vld [vmem:[%s5 + $0x58] sm:$0xff]
    %v334 = vld [vmem:[%s5 + $0x60] sm:$0xff]
    %v335 = vld [vmem:[%s5 + $0x68] sm:$0xff]
    %v336 = vld [vmem:[%s5 + $0x70] sm:$0xff]
    %v337 = vld [vmem:[%s5 + $0x78] sm:$0xff]
    %v338 = vld [vmem:[%s6] sm:$0x1]
    %v340 = vperm.slane %v338, 0
    %342 = vmatpush.msra.mxu0 %v337
    %343 = vmatpush.msra.mxu0 %v336
    %344 = vmatpush.msra.mxu0 %v335
    %345 = vmatpush.msra.mxu0 %v334
    %346 = vmatpush.msra.mxu0 %v333
    %347 = vmatpush.msra.mxu0 %v332
    %348 = vmatpush.msra.mxu0 %v331
    %349 = vmatpush.msra.mxu0 %v330
    %350 = vmatpush.msra.mxu0 %v329
    %351 = vmatpush.msra.mxu0 %v328
    %352 = vmatpush.msra.mxu0 %v327
    %353 = vmatpush.msra.mxu0 %v326
    %354 = vmatpush.msra.mxu0 %v325
    %355 = vmatpush.msra.mxu0 %v324
    %356 = vmatpush.msra.mxu0 %v323
    %357 = vmatpush.msra.mxu0 %v322
    %358 = vmatmul.f32.gmra.mxu0 %v321
    %v359 = vpop.f32.mrf.mxu0
    %v360 = vadd.f32 %v340, %v359
    %361 = vdwg.mxu0
    %362 = vst [vmem:[#allocation2] sm:$0xff] %v360
    // Predicated region
    $region30: #{dnn_forward.1} parent=1 // pred_check
      _
    $region31: #{dnn_forward.1} parent=1 // pred_check_branch
      %364 = sbr.rel (0) target = $region33
    $region32: #{dnn_forward.1} parent=1 // pred_region
      %366 = vsyncadd [#allocation3], 0
      %s368 = sshll.u32 [#allocation2], 4
      %s369 = int_to_ptr.vmem [resolvable:$true] %s368
      %s370 = sshll.u32 %s7, 4
      %s371 = int_to_ptr.hbm [resolvable:$true] %s370
      %373 = dma.vmem_to_hbm [thread:$0]  %s369, 128, %s371, [#allocation3]
    $region33: #{dnn_forward.1} parent=1 // pred_fallthru
      _
    // Predicated region
    $region34: #{dnn_forward.1} parent=1 // pred_check
      _
    $region35: #{dnn_forward.1} parent=1 // pred_check_branch
      %375 = sbr.rel (0) target = $region37
    $region36: #{dnn_forward.1} parent=1 // pred_region
      %377 = dma.done [#allocation3], 128
    $region37: #{dnn_forward.1} parent=1 // pred_fallthru
      _
    %378 = vsyncpa [#allocation3], 1

</llo_original>
